<compile_context>
chip_gen: v6e
topology: v6e:2x2x1
jax: 0.10.0
libtpu: 0.0.40
codegen_flags: <defaults>
</compile_context>

<pallas_src>
import functools

import jax
import jax.numpy as jnp
from jax.experimental import pallas as pl
from jax.experimental.pallas import tpu as pltpu

EPSILON = 0.0001


def _pick_tile(full, target, align):
    """Largest divisor of `full` that is <= target and a multiple of `align`.

    Falls back to `full` itself (always a legal block dim)."""
    for cand in range(min(target, full), 0, -1):
        if full % cand == 0 and cand % align == 0:
            return cand
    return full


def _fape_kernel(a_ref, b_ref, fm_ref, pm_ref, rand_ref, out_ref, *, d_clamp):
    fi = pl.program_id(1)
    pi = pl.program_id(2)

    # Output block is resident across the (fi, pi) reduction axes; init once.
    @pl.when(jnp.logical_and(fi == 0, pi == 0))
    def _():
        out_ref[...] = jnp.zeros_like(out_ref)

    B = b_ref[...]                       # (8, Pt): [pp_x,pp_y,pp_z,pt_x,pt_y,pt_z,1,0]

    # delta_b = A_b @ B  ==  (Rp^T (pp - tp) - Rt^T (pt - tt))_b   on the MXU.
    d0 = jnp.dot(a_ref[0], B, preferred_element_type=jnp.float32)   # (Ft, Pt)
    dsq = d0 * d0 + jnp.float32(EPSILON)
    d1 = jnp.dot(a_ref[1], B, preferred_element_type=jnp.float32)
    dsq = dsq + d1 * d1
    d2 = jnp.dot(a_ref[2], B, preferred_element_type=jnp.float32)
    dsq = dsq + d2 * d2
    d = jnp.sqrt(dsq)

    # Bernoulli(clamp_prob) clamp decisions (precomputed, streamed in as 0/1).
    clamp_flag = jnp.logical_and(rand_ref[...] > jnp.float32(0.5),
                                 d > jnp.float32(d_clamp))
    d_cl = jnp.where(clamp_flag, jnp.float32(d_clamp), d)

    # Factored masked sum: sum_fj fm[f]*pm[j]*d_cl[f,j]
    #   = sum_f fm[f] * (lane-reduce_j pm[j]*d_cl[f,j])   -- no (F,P) mask built.
    row = jnp.sum(d_cl * pm_ref[...], axis=1, keepdims=True)        # (Ft, 1)
    out_ref[...] += jnp.sum(row * fm_ref[...], axis=0, keepdims=True)  # (1, 1)


def full_frame_alignment_loss(R_pred, t_pred, pos14_pred,
                              R_true, t_true, pos14_true,
                              frame_mask, pos14_mask,
                              *, d_clamp=10.0, scale=1.0, clamp_prob=0.9,
                              clamp_mode='pair', seed=0,
                              f_tile_target=256, p_tile_target=512):
    # TODO(synk): clamp_mode='data' path (shape-inconsistent expand in the
    # reference) is not implemented; only the default 'pair' mode is supported.
    assert clamp_mode == 'pair'

    N, L = t_pred.shape[:2]
    F = L * 6
    P = L * 14
    f32 = jnp.float32

    Rp = R_pred.reshape(N, F, 3, 3).astype(f32)     # [n, f, a, b]
    Rt = R_true.reshape(N, F, 3, 3).astype(f32)
    tp = t_pred.reshape(N, F, 3).astype(f32)
    tt = t_true.reshape(N, F, 3).astype(f32)
    pp = pos14_pred.reshape(N, P, 3).astype(f32)    # [n, j, a]
    pt = pos14_true.reshape(N, P, 3).astype(f32)

    # Translation correction c[n, f, b] = (Rp^T tp - Rt^T tt)_b  -- tiny, done here.
    c = (jnp.einsum('nfab,nfa->nfb', Rp, tp)
         - jnp.einsum('nfab,nfa->nfb', Rt, tt))

    # LHS slabs A[n, b, f, :] = [Rp[f,:,b], -Rt[f,:,b], -c[f,b], 0]   -> (N, 3, F, 8)
    A = jnp.concatenate(
        [jnp.transpose(Rp, (0, 3, 1, 2)),
         -jnp.transpose(Rt, (0, 3, 1, 2)),
         -jnp.transpose(c, (0, 2, 1))[..., None],
         jnp.zeros((N, 3, F, 1), f32)], axis=-1)

    # RHS B[n, :, j] = [pp_xyz, pt_xyz, 1, 0]   -> (N, 8, P)
    B = jnp.concatenate(
        [jnp.transpose(pp, (0, 2, 1)),
         jnp.transpose(pt, (0, 2, 1)),
         jnp.ones((N, 1, P), f32),
         jnp.zeros((N, 1, P), f32)], axis=1)

    fm = frame_mask.reshape(N, F, 1).astype(f32)
    pm = pos14_mask.reshape(N, 1, P).astype(f32)

    # Per-pair Bernoulli clamp decisions (host/JAX RNG; stream differs from
    # torch.bernoulli but the distribution matches).
    key = jax.random.PRNGKey(seed)
    clamp_rand = jax.random.bernoulli(key, float(clamp_prob), (N, F, P)).astype(f32)

    Ft = _pick_tile(F, f_tile_target, 8)
    Pt = _pick_tile(P, p_tile_target, 128)
    nf = F // Ft
    npt = P // Pt

    kernel = functools.partial(_fape_kernel, d_clamp=float(d_clamp))

    grid_spec = pltpu.PrefetchScalarGridSpec(
        num_scalar_prefetch=0,
        grid=(N, nf, npt),
        in_specs=[
            pl.BlockSpec((None, 3, Ft, 8), lambda n, fi, pi: (n, 0, fi, 0)),   # A
            pl.BlockSpec((None, 8, Pt),    lambda n, fi, pi: (n, 0, pi)),      # B
            pl.BlockSpec((None, Ft, 1),    lambda n, fi, pi: (n, fi, 0)),      # frame mask
            pl.BlockSpec((None, 1, Pt),    lambda n, fi, pi: (n, 0, pi)),      # pos14 mask
            pl.BlockSpec((None, Ft, Pt),   lambda n, fi, pi: (n, fi, pi)),     # clamp rand
        ],
        out_specs=pl.BlockSpec((None, 1, 1), lambda n, fi, pi: (n, 0, 0)),     # sum(d*mask)
    )

    sum_d = pl.pallas_call(
        kernel,
        out_shape=jax.ShapeDtypeStruct((N, 1, 1), f32),
        grid_spec=grid_spec,
        compiler_params=pltpu.CompilerParams(
            dimension_semantics=("parallel", "arbitrary", "arbitrary")),
    )(A, B, fm, pm, clamp_rand)

    # sum(mask_pair) factors exactly: sum(frame_mask) * sum(pos14_mask).
    sum_m = (jnp.sum(frame_mask.reshape(N, F).astype(f32), axis=1)
             * jnp.sum(pos14_mask.reshape(N, P).astype(f32), axis=1))

    loss = jnp.mean(sum_d[:, 0, 0] / sum_m) / scale
    return loss


if __name__ == "__main__":
    # Module has no learned parameters; only hyperparameters d_clamp/scale/clamp_prob.
    N, L = 2, 8
    key = jax.random.PRNGKey(0)
    ks = jax.random.split(key, 8)

    R_pred = jax.random.normal(ks[0], (N, L, 6, 3, 3), jnp.float32)
    t_pred = jax.random.normal(ks[1], (N, L, 6, 3), jnp.float32)
    pos14_pred = 3.0 * jax.random.normal(ks[2], (N, L, 14, 3), jnp.float32)
    R_true = jax.random.normal(ks[3], (N, L, 6, 3, 3), jnp.float32)
    t_true = jax.random.normal(ks[4], (N, L, 6, 3), jnp.float32)
    pos14_true = 3.0 * jax.random.normal(ks[5], (N, L, 14, 3), jnp.float32)
    frame_mask = jax.random.bernoulli(ks[6], 0.9, (N, L, 6))
    pos14_mask = jax.random.bernoulli(ks[7], 0.85, (N, L, 14))
    # guarantee non-empty masks
    frame_mask = frame_mask.at[:, 0, 0].set(True)
    pos14_mask = pos14_mask.at[:, 0, 0].set(True)

    loss = full_frame_alignment_loss(
        R_pred, t_pred, pos14_pred, R_true, t_true, pos14_true,
        frame_mask, pos14_mask,
        d_clamp=10.0, scale=1.0, clamp_prob=0.9, seed=1234)
    jax.block_until_ready(loss)
    assert loss.shape == () and jnp.isfinite(loss)
    print("KERNEL_OK")
</pallas_src>

<mosaic_0001>
module attributes {stable_mosaic.version = 11 : i64} {
  func.func @_fape_kernel(%arg0: i32, %arg1: i32, %arg2: i32, %arg3: memref<1x3x48x8xf32, #tpu.memory_space<vmem>>, %arg4: memref<1x8x112xf32, #tpu.memory_space<vmem>>, %arg5: memref<1x48x1xf32, #tpu.memory_space<vmem>>, %arg6: memref<1x1x112xf32, #tpu.memory_space<vmem>>, %arg7: memref<1x48x112xf32, #tpu.memory_space<vmem>>, %arg8: memref<1x1x1xf32, #tpu.memory_space<vmem>>) attributes {dimension_semantics = [#tpu.dimension_semantics<parallel>, #tpu.dimension_semantics<arbitrary>, #tpu.dimension_semantics<arbitrary>], iteration_bounds = array<i64: 2, 1, 1>, scalar_prefetch = 0 : i64, scratch_operands = 0 : i64, tpu.core_type = #tpu.core_type<tc>, window_params = [{transform_indices = @transform_0, window_bounds = array<i64: 1, 3, 48, 8>}, {transform_indices = @transform_1, window_bounds = array<i64: 1, 8, 112>}, {transform_indices = @transform_2, window_bounds = array<i64: 1, 48, 1>}, {transform_indices = @transform_3, window_bounds = array<i64: 1, 1, 112>}, {transform_indices = @transform_4, window_bounds = array<i64: 1, 48, 112>}, {transform_indices = @transform_5, window_bounds = array<i64: 1, 1, 1>}]} {
    %c0_i32 = arith.constant 0 : i32
    %0 = arith.cmpi eq, %arg1, %c0_i32 : i32
    %c0_i32_0 = arith.constant 0 : i32
    %1 = arith.cmpi eq, %arg2, %c0_i32_0 : i32
    %2 = arith.andi %0, %1 : i1
    %3 = arith.extui %2 : i1 to i32
    %c0_i32_1 = arith.constant 0 : i32
    %4 = arith.cmpi ne, %3, %c0_i32_1 : i32
    scf.if %4 {
      %cst_37 = arith.constant 0.000000e+00 : f32
      %50 = vector.broadcast %cst_37 : f32 to vector<1x1xf32>
      %c0_38 = arith.constant 0 : index
      %c0_39 = arith.constant 0 : index
      %c0_40 = arith.constant 0 : index
      %51 = vector.load %arg8[%c0_38, %c0_39, %c0_40] : memref<1x1x1xf32, #tpu.memory_space<vmem>>, vector<1x1x1xf32>
      %52 = vector.shape_cast %51 : vector<1x1x1xf32> to vector<1x1xf32>
      %53 = vector.shape_cast %50 : vector<1x1xf32> to vector<1x1x1xf32>
      tpu.vector_store %arg8[%c0_38, %c0_39, %c0_40], %53 {strides = array<i32>} : memref<1x1x1xf32, #tpu.memory_space<vmem>>, vector<1x1x1xf32>,
    } else {
    }
    %c0 = arith.constant 0 : index
    %c0_2 = arith.constant 0 : index
    %c0_3 = arith.constant 0 : index
    %5 = vector.load %arg4[%c0, %c0_2, %c0_3] : memref<1x8x112xf32, #tpu.memory_space<vmem>>, vector<1x8x112xf32>
    %6 = vector.shape_cast %5 : vector<1x8x112xf32> to vector<8x112xf32>
    %c0_4 = arith.constant 0 : index
    %c0_5 = arith.constant 0 : index
    %c0_6 = arith.constant 0 : index
    %c0_7 = arith.constant 0 : index
    %7 = vector.load %arg3[%c0_4, %c0_5, %c0_6, %c0_7] : memref<1x3x48x8xf32, #tpu.memory_space<vmem>>, vector<1x1x48x8xf32>
    %8 = vector.shape_cast %7 : vector<1x1x48x8xf32> to vector<48x8xf32>
    %cst = arith.constant dense<0.000000e+00> : vector<48x112xf32>
    %9 = tpu.matmul %8, %6, %cst {dimension_numbers = #tpu.dot_dimension_numbers<[1], [0], [0], [1], [0, 0, 1, 1], [], []>} : vector<48x8xf32>, vector<8x112xf32>, vector<48x112xf32> -> vector<48x112xf32>
    %10 = arith.mulf %9, %9 : vector<48x112xf32>
    %cst_8 = arith.constant 9.99999974E-5 : f32
    %11 = vector.broadcast %cst_8 : f32 to vector<48x112xf32>
    %12 = arith.addf %10, %11 : vector<48x112xf32>
    %c0_9 = arith.constant 0 : index
    %c1 = arith.constant 1 : index
    %c0_10 = arith.constant 0 : index
    %c0_11 = arith.constant 0 : index
    %13 = vector.load %arg3[%c0_9, %c1, %c0_10, %c0_11] : memref<1x3x48x8xf32, #tpu.memory_space<vmem>>, vector<1x1x48x8xf32>
    %14 = vector.shape_cast %13 : vector<1x1x48x8xf32> to vector<48x8xf32>
    %cst_12 = arith.constant dense<0.000000e+00> : vector<48x112xf32>
    %15 = tpu.matmul %14, %6, %cst_12 {dimension_numbers = #tpu.dot_dimension_numbers<[1], [0], [0], [1], [0, 0, 1, 1], [], []>} : vector<48x8xf32>, vector<8x112xf32>, vector<48x112xf32> -> vector<48x112xf32>
    %16 = arith.mulf %15, %15 : vector<48x112xf32>
    %17 = arith.addf %12, %16 : vector<48x112xf32>
    %c0_13 = arith.constant 0 : index
    %c2 = arith.constant 2 : index
    %c0_14 = arith.constant 0 : index
    %c0_15 = arith.constant 0 : index
    %18 = vector.load %arg3[%c0_13, %c2, %c0_14, %c0_15] : memref<1x3x48x8xf32, #tpu.memory_space<vmem>>, vector<1x1x48x8xf32>
    %19 = vector.shape_cast %18 : vector<1x1x48x8xf32> to vector<48x8xf32>
    %cst_16 = arith.constant dense<0.000000e+00> : vector<48x112xf32>
    %20 = tpu.matmul %19, %6, %cst_16 {dimension_numbers = #tpu.dot_dimension_numbers<[1], [0], [0], [1], [0, 0, 1, 1], [], []>} : vector<48x8xf32>, vector<8x112xf32>, vector<48x112xf32> -> vector<48x112xf32>
    %21 = arith.mulf %20, %20 : vector<48x112xf32>
    %22 = arith.addf %17, %21 : vector<48x112xf32>
    %23 = math.sqrt %22 : vector<48x112xf32>
    %c0_17 = arith.constant 0 : index
    %c0_18 = arith.constant 0 : index
    %c0_19 = arith.constant 0 : index
    %24 = vector.load %arg7[%c0_17, %c0_18, %c0_19] : memref<1x48x112xf32, #tpu.memory_space<vmem>>, vector<1x48x112xf32>
    %25 = vector.shape_cast %24 : vector<1x48x112xf32> to vector<48x112xf32>
    %cst_20 = arith.constant 5.000000e-01 : f32
    %26 = vector.broadcast %cst_20 : f32 to vector<48x112xf32>
    %27 = arith.cmpf ogt, %25, %26 : vector<48x112xf32>
    %cst_21 = arith.constant 1.000000e+01 : f32
    %28 = vector.broadcast %cst_21 : f32 to vector<48x112xf32>
    %29 = arith.cmpf ogt, %23, %28 : vector<48x112xf32>
    %30 = arith.andi %27, %29 : vector<48x112xi1>
    %cst_22 = arith.constant 1.000000e+01 : f32
    %31 = vector.broadcast %cst_22 : f32 to vector<48x112xf32>
    %32 = arith.select %30, %31, %23 : vector<48x112xi1>, vector<48x112xf32>
    %c0_23 = arith.constant 0 : index
    %c0_24 = arith.constant 0 : index
    %c0_25 = arith.constant 0 : index
    %33 = vector.load %arg6[%c0_23, %c0_24, %c0_25] : memref<1x1x112xf32, #tpu.memory_space<vmem>>, vector<1x1x112xf32>
    %34 = vector.shape_cast %33 : vector<1x1x112xf32> to vector<1x112xf32>
    %35 = vector.broadcast %34 : vector<1x112xf32> to vector<48x112xf32>
    %36 = arith.mulf %32, %35 : vector<48x112xf32>
    %cst_26 = arith.constant dense<0.000000e+00> : vector<48xf32>
    %37 = vector.multi_reduction <add>, %36, %cst_26 [1] : vector<48x112xf32> to vector<48xf32>
    %38 = vector.shape_cast %37 : vector<48xf32> to vector<48x1xf32>
    %c0_27 = arith.constant 0 : index
    %c0_28 = arith.constant 0 : index
    %c0_29 = arith.constant 0 : index
    %39 = vector.load %arg8[%c0_27, %c0_28, %c0_29] : memref<1x1x1xf32, #tpu.memory_space<vmem>>, vector<1x1x1xf32>
    %40 = vector.shape_cast %39 : vector<1x1x1xf32> to vector<1x1xf32>
    %c0_30 = arith.constant 0 : index
    %c0_31 = arith.constant 0 : index
    %c0_32 = arith.constant 0 : index
    %41 = vector.load %arg5[%c0_30, %c0_31, %c0_32] : memref<1x48x1xf32, #tpu.memory_space<vmem>>, vector<1x48x1xf32>
    %42 = vector.shape_cast %41 : vector<1x48x1xf32> to vector<48x1xf32>
    %43 = arith.mulf %38, %42 : vector<48x1xf32>
    %cst_33 = arith.constant dense<0.000000e+00> : vector<1xf32>
    %44 = vector.multi_reduction <add>, %43, %cst_33 [0] : vector<48x1xf32> to vector<1xf32>
    %45 = vector.shape_cast %44 : vector<1xf32> to vector<1x1xf32>
    %46 = arith.addf %40, %45 : vector<1x1xf32>
    %c0_34 = arith.constant 0 : index
    %c0_35 = arith.constant 0 : index
    %c0_36 = arith.constant 0 : index
    %47 = vector.load %arg8[%c0_34, %c0_35, %c0_36] : memref<1x1x1xf32, #tpu.memory_space<vmem>>, vector<1x1x1xf32>
    %48 = vector.shape_cast %47 : vector<1x1x1xf32> to vector<1x1xf32>
    %49 = vector.shape_cast %46 : vector<1x1xf32> to vector<1x1x1xf32>
    tpu.vector_store %arg8[%c0_34, %c0_35, %c0_36], %49 {strides = array<i32>} : memref<1x1x1xf32, #tpu.memory_space<vmem>>, vector<1x1x1xf32>,
    return
  }
  func.func @transform_0(%arg0: i32, %arg1: i32, %arg2: i32) -> (i32, i32, i32, i32) {
    %c0_i32 = arith.constant 0 : i32
    %c0_i32_0 = arith.constant 0 : i32
    %c0_i32_1 = arith.constant 0 : i32
    return %arg0, %c0_i32, %arg1, %c0_i32_0 : i32, i32, i32, i32
  }
  func.func @transform_1(%arg0: i32, %arg1: i32, %arg2: i32) -> (i32, i32, i32) {
    %c0_i32 = arith.constant 0 : i32
    %c0_i32_0 = arith.constant 0 : i32
    return %arg0, %c0_i32, %arg2 : i32, i32, i32
  }
  func.func @transform_2(%arg0: i32, %arg1: i32, %arg2: i32) -> (i32, i32, i32) {
    %c0_i32 = arith.constant 0 : i32
    %c0_i32_0 = arith.constant 0 : i32
    return %arg0, %arg1, %c0_i32 : i32, i32, i32
  }
  func.func @transform_3(%arg0: i32, %arg1: i32, %arg2: i32) -> (i32, i32, i32) {
    %c0_i32 = arith.constant 0 : i32
    %c0_i32_0 = arith.constant 0 : i32
    return %arg0, %c0_i32, %arg2 : i32, i32, i32
  }
  func.func @transform_4(%arg0: i32, %arg1: i32, %arg2: i32) -> (i32, i32, i32) {
    %c0_i32 = arith.constant 0 : i32
    return %arg0, %arg1, %arg2 : i32, i32, i32
  }
  func.func @transform_5(%arg0: i32, %arg1: i32, %arg2: i32) -> (i32, i32, i32) {
    %c0_i32 = arith.constant 0 : i32
    %c0_i32_0 = arith.constant 0 : i32
    %c0_i32_1 = arith.constant 0 : i32
    return %arg0, %c0_i32, %c0_i32_0 : i32, i32, i32
  }
}

</mosaic_0001>

<llo_original>
// kernel: tpu_custom_call.1
$region0: #{tpu_custom_call.1}
  #allocation0 [shape = 'u32[]', space=smem, size = 0x4, offset = 0x4, fixed_abs, tag = 'smem constant byte address 0x4 - core index']
  #allocation1 [shape = 'u32[144,128]{1,0:T(1,128)}', space=vmem, size = 0x12000, scoped, tag = 'internal scratch']
  %s0 = inlined_call_operand.vmem [shape: f32[2,3,48,8], index: 0, kind: input, shape index: {}]
  %s1 = inlined_call_operand.vmem [shape: f32[2,8,112], index: 1, kind: input, shape index: {}]
  %s2 = inlined_call_operand.vmem [shape: f32[2,48,1], index: 2, kind: input, shape index: {}]
  %s3 = inlined_call_operand.vmem [shape: f32[2,1,112], index: 3, kind: input, shape index: {}]
  %s4 = inlined_call_operand.vmem [shape: f32[2,48,112], index: 4, kind: input, shape index: {}]
  %s5 = inlined_call_operand.vmem [shape: f32[2,1,1], index: 5, kind: output, shape index: {}]
  %s6 = sld [smem:[#allocation0]]
  $region57: #{tpu_custom_call.1} parent=0
    _
  %s8 = ssub.s32 1, %s6
  %s9 = scalar_select 0, %s8, %s6
  loop: start=0, step=1, limit=4
  $region2: #{tpu_custom_call.1} parent=0 // loop_pre_header
    _
  $region3: #{tpu_custom_call.1} parent=0 // loop_header
    %s11 = sphi 0, %s15
    %p12 = scmp.ge.s32.totalorder %s11, 4
    %s18 = sphi 0, %s37
    %s19 = sphi 0, %s33
    %s20 = sphi 0, %s29
    %s21 = sphi 0, %s18
    %s22 = sphi 0, %s19
    %s23 = sphi 0, %s20
    %s24 = sphi 0, %s21
    %s25 = sphi 0, %s22
    %s26 = sphi 0, %s23
    %s42 = sphi 0, %s44
    %s45 = sphi 0, %s42
    %s46 = sphi 0, %s45
    %s62 = sphi 0, %s46
    %s70 = sphi 0, %s72
    %s73 = sphi 0, %s70
    %s74 = sphi 0, %s73
    %s90 = sphi 0, %s74
    %s98 = sphi 0, %s100
    %s101 = sphi 0, %s98
    %s102 = sphi 0, %s101
    %s118 = sphi 0, %s102
    %s126 = sphi 0, %s128
    %s129 = sphi 0, %s126
    %s130 = sphi 0, %s129
    %s146 = sphi 0, %s130
    %s156 = sphi 0, %s158
    %s159 = sphi 0, %s156
    %s160 = sphi 0, %s159
    %s176 = sphi 0, %s160
    %s182 = sphi 0, %s184
    %s185 = sphi 0, %s182
    %s186 = sphi 0, %s185
    %s202 = sphi 0, %s186
  $region4: #{tpu_custom_call.1} parent=0 // loop_header_branch
    %14 = sbr.rel (%p12) target = $region8
  $region5: #{tpu_custom_call.1} parent=0 // loop_body
    %s16 = ssub.s32 %s11, 1
    %s17 = ssub.s32 %s11, 2
    %s27 = sadd.s32 1, %s20
    %p28 = scmp.ge.s32.totalorder %s27, 1
    %s29 = scalar_select %p28, 0, %s27
    %s30 = sadd.s32 1, %s19
    %s31 = scalar_select %p28, %s30, %s19
    %p32 = scmp.ge.s32.totalorder %s31, 1
    %s33 = scalar_select %p32, 0, %s31
    %s34 = sadd.s32 1, %s18
    %s35 = scalar_select %p32, %s34, %s18
    %p36 = scmp.ge.s32.totalorder %s35, 2
    %s37 = scalar_select %p36, 0, %s35
    %s38 = ssub.s32 %s18, %s37
    %s39 = ssub.s32 %s19, %s33
    %s40 = sor.u32 %s38, %s39
    %p41 = scmp.eq.s32.totalorder %s40, 0
    %s43 = sadd.s32 %s42, 1
    %s44 = scalar_select %p41, %s42, %s43
    %p47 = pneg %p41
    %p48 = scmp.eq.s32.totalorder %s11, 1
    %p49 = por %p47, %p48
    %p50 = scmp.ne.s32.totalorder %s42, %s45
    %p51 = scmp.eq.s32.totalorder %s11, 0
    %p52 = por %p50, %p51
    %p53 = scmp.ne.s32.totalorder %s42, %s45
    %p54 = scmp.eq.s32.totalorder %s16, 1
    %p55 = por %p53, %p54
    %p56 = scmp.ne.s32.totalorder %s45, %s46
    %p57 = scmp.eq.s32.totalorder %s16, 0
    %p58 = por %p56, %p57
    %p59 = scmp.ne.s32.totalorder %s45, %s46
    %p60 = scmp.eq.s32.totalorder %s17, 1
    %p61 = por %p59, %p60
    %p63 = scmp.ne.s32.totalorder %s46, %s62
    %p64 = scmp.eq.s32.totalorder %s17, 0
    %p65 = por %p63, %p64
    %s66 = ssub.s32 %s18, %s37
    %s67 = ssub.s32 %s20, %s29
    %s68 = sor.u32 %s66, %s67
    %p69 = scmp.eq.s32.totalorder %s68, 0
    %s71 = sadd.s32 %s70, 1
    %s72 = scalar_select %p69, %s70, %s71
    %p75 = pneg %p69
    %p76 = scmp.eq.s32.totalorder %s11, 1
    %p77 = por %p75, %p76
    %p78 = scmp.ne.s32.totalorder %s70, %s73
    %p79 = scmp.eq.s32.totalorder %s11, 0
    %p80 = por %p78, %p79
    %p81 = scmp.ne.s32.totalorder %s70, %s73
    %p82 = scmp.eq.s32.totalorder %s16, 1
    %p83 = por %p81, %p82
    %p84 = scmp.ne.s32.totalorder %s73, %s74
    %p85 = scmp.eq.s32.totalorder %s16, 0
    %p86 = por %p84, %p85
    %p87 = scmp.ne.s32.totalorder %s73, %s74
    %p88 = scmp.eq.s32.totalorder %s17, 1
    %p89 = por %p87, %p88
    %p91 = scmp.ne.s32.totalorder %s74, %s90
    %p92 = scmp.eq.s32.totalorder %s17, 0
    %p93 = por %p91, %p92
    %s94 = ssub.s32 %s18, %s37
    %s95 = ssub.s32 %s19, %s33
    %s96 = sor.u32 %s94, %s95
    %p97 = scmp.eq.s32.totalorder %s96, 0
    %s99 = sadd.s32 %s98, 1
    %s100 = scalar_select %p97, %s98, %s99
    %p103 = pneg %p97
    %p104 = scmp.eq.s32.totalorder %s11, 1
    %p105 = por %p103, %p104
    %p106 = scmp.ne.s32.totalorder %s98, %s101
    %p107 = scmp.eq.s32.totalorder %s11, 0
    %p108 = por %p106, %p107
    %p109 = scmp.ne.s32.totalorder %s98, %s101
    %p110 = scmp.eq.s32.totalorder %s16, 1
    %p111 = por %p109, %p110
    %p112 = scmp.ne.s32.totalorder %s101, %s102
    %p113 = scmp.eq.s32.totalorder %s16, 0
    %p114 = por %p112, %p113
    %p115 = scmp.ne.s32.totalorder %s101, %s102
    %p116 = scmp.eq.s32.totalorder %s17, 1
    %p117 = por %p115, %p116
    %p119 = scmp.ne.s32.totalorder %s102, %s118
    %p120 = scmp.eq.s32.totalorder %s17, 0
    %p121 = por %p119, %p120
    %s122 = ssub.s32 %s18, %s37
    %s123 = ssub.s32 %s20, %s29
    %s124 = sor.u32 %s122, %s123
    %p125 = scmp.eq.s32.totalorder %s124, 0
    %s127 = sadd.s32 %s126, 1
    %s128 = scalar_select %p125, %s126, %s127
    %p131 = pneg %p125
    %p132 = scmp.eq.s32.totalorder %s11, 1
    %p133 = por %p131, %p132
    %p134 = scmp.ne.s32.totalorder %s126, %s129
    %p135 = scmp.eq.s32.totalorder %s11, 0
    %p136 = por %p134, %p135
    %p137 = scmp.ne.s32.totalorder %s126, %s129
    %p138 = scmp.eq.s32.totalorder %s16, 1
    %p139 = por %p137, %p138
    %p140 = scmp.ne.s32.totalorder %s129, %s130
    %p141 = scmp.eq.s32.totalorder %s16, 0
    %p142 = por %p140, %p141
    %p143 = scmp.ne.s32.totalorder %s129, %s130
    %p144 = scmp.eq.s32.totalorder %s17, 1
    %p145 = por %p143, %p144
    %p147 = scmp.ne.s32.totalorder %s130, %s146
    %p148 = scmp.eq.s32.totalorder %s17, 0
    %p149 = por %p147, %p148
    %s150 = ssub.s32 %s18, %s37
    %s151 = ssub.s32 %s19, %s33
    %s152 = sor.u32 %s150, %s151
    %s153 = ssub.s32 %s20, %s29
    %s154 = sor.u32 %s152, %s153
    %p155 = scmp.eq.s32.totalorder %s154, 0
    %s157 = sadd.s32 %s156, 1
    %s158 = scalar_select %p155, %s156, %s157
    %p161 = pneg %p155
    %p162 = scmp.eq.s32.totalorder %s11, 1
    %p163 = por %p161, %p162
    %p164 = scmp.ne.s32.totalorder %s156, %s159
    %p165 = scmp.eq.s32.totalorder %s11, 0
    %p166 = por %p164, %p165
    %p167 = scmp.ne.s32.totalorder %s156, %s159
    %p168 = scmp.eq.s32.totalorder %s16, 1
    %p169 = por %p167, %p168
    %p170 = scmp.ne.s32.totalorder %s159, %s160
    %p171 = scmp.eq.s32.totalorder %s16, 0
    %p172 = por %p170, %p171
    %p173 = scmp.ne.s32.totalorder %s159, %s160
    %p174 = scmp.eq.s32.totalorder %s17, 1
    %p175 = por %p173, %p174
    %p177 = scmp.ne.s32.totalorder %s160, %s176
    %p178 = scmp.eq.s32.totalorder %s17, 0
    %p179 = por %p177, %p178
    %s180 = ssub.s32 %s18, %s37
    %p181 = scmp.eq.s32.totalorder %s180, 0
    %s183 = sadd.s32 %s182, 1
    %s184 = scalar_select %p181, %s182, %s183
    %p187 = pneg %p181
    %p188 = scmp.eq.s32.totalorder %s11, 1
    %p189 = por %p187, %p188
    %p190 = scmp.ne.s32.totalorder %s182, %s185
    %p191 = scmp.eq.s32.totalorder %s11, 0
    %p192 = por %p190, %p191
    %p193 = scmp.ne.s32.totalorder %s182, %s185
    %p194 = scmp.eq.s32.totalorder %s16, 1
    %p195 = por %p193, %p194
    %p196 = scmp.ne.s32.totalorder %s185, %s186
    %p197 = scmp.eq.s32.totalorder %s16, 0
    %p198 = por %p196, %p197
    %p199 = scmp.ne.s32.totalorder %s185, %s186
    %p200 = scmp.eq.s32.totalorder %s17, 1
    %p201 = por %p199, %p200
    %p203 = scmp.ne.s32.totalorder %s186, %s202
    %p204 = scmp.eq.s32.totalorder %s17, 0
    %p205 = por %p203, %p204
    %p206 = scmp.le.s32.totalorder 1, %s11
    %p207 = scmp.lt.s32.totalorder %s11, 3
    %p208 = pnand %p206, %p207
    %p209 = pneg %p208
    // Predicated region
    $region9: #{tpu_custom_call.1} parent=5 // pred_check
      _
    $region10: #{tpu_custom_call.1} parent=5 // pred_check_branch
      %211 = sbr.rel (%p208) target = $region12
    $region11: #{tpu_custom_call.1} parent=5 // pred_region
      %s212 = ssub.s32 %s11, 1
    $region12: #{tpu_custom_call.1} parent=5 // pred_fallthru
      _
    %p213 = scmp.lt.s32.totalorder %s11, 2
    // Predicated region
    $region13: #{tpu_custom_call.1} parent=5 // pred_check
      %p214 = pneg %p213
    $region14: #{tpu_custom_call.1} parent=5 // pred_check_branch
      %216 = sbr.rel (%p214) target = $region16
    $region15: #{tpu_custom_call.1} parent=5 // pred_region
      // Predicated region
      $region17: #{tpu_custom_call.1} parent=15 // pred_check
        %p217 = pneg %p52
      $region18: #{tpu_custom_call.1} parent=15 // pred_check_branch
        %219 = sbr.rel (%p217) target = $region20
      $region19: #{tpu_custom_call.1} parent=15 // pred_region
        %s220 = smul.u32 6, %s19
        %p221 = scmp.lt.s32.totalorder %s18, 1
        %s222 = scalar_select %p221, %s18, 1
        %p223 = scmp.lt.s32.totalorder %s220, 5
        %s224 = scalar_select %p223, %s220, 5
        %s225 = smul.addr %s222, 18
        %s226 = sadd.s32 %s224, %s225
        %s227 = smul.addr %s226, 8
        %s228 = scalar_lea.vmem %s0, %s227
        %s229 = smul.u32 6, %s19
      $region20: #{tpu_custom_call.1} parent=15 // pred_fallthru
        _
      // Predicated region
      $region21: #{tpu_custom_call.1} parent=15 // pred_check
        %p230 = pneg %p80
      $region22: #{tpu_custom_call.1} parent=15 // pred_check_branch
        %232 = sbr.rel (%p230) target = $region24
      $region23: #{tpu_custom_call.1} parent=15 // pred_region
        %p233 = scmp.lt.s32.totalorder %s18, 1
        %s234 = scalar_select %p233, %s18, 1
        %p235 = scmp.lt.s32.totalorder %s20, 0
        %s236 = scalar_select %p235, %s20, 0
        %s237 = sadd.s32 %s236, %s234
        %s238 = smul.addr %s237, 8
        %s239 = scalar_lea.vmem %s1, %s238
      $region24: #{tpu_custom_call.1} parent=15 // pred_fallthru
        _
      // Predicated region
      $region25: #{tpu_custom_call.1} parent=15 // pred_check
        %p240 = pneg %p108
      $region26: #{tpu_custom_call.1} parent=15 // pred_check_branch
        %242 = sbr.rel (%p240) target = $region28
      $region27: #{tpu_custom_call.1} parent=15 // pred_region
        %s243 = smul.u32 6, %s19
        %p244 = scmp.lt.s32.totalorder %s18, 1
        %s245 = scalar_select %p244, %s18, 1
        %p246 = scmp.lt.s32.totalorder %s243, 5
        %s247 = scalar_select %p246, %s243, 5
        %s248 = smul.addr %s245, 6
        %s249 = sadd.s32 %s247, %s248
        %s250 = smul.addr %s249, 8
        %s251 = scalar_lea.vmem %s2, %s250
        %s252 = smul.u32 6, %s19
      $region28: #{tpu_custom_call.1} parent=15 // pred_fallthru
        _
      // Predicated region
      $region29: #{tpu_custom_call.1} parent=15 // pred_check
        %p253 = pneg %p136
      $region30: #{tpu_custom_call.1} parent=15 // pred_check_branch
        %255 = sbr.rel (%p253) target = $region32
      $region31: #{tpu_custom_call.1} parent=15 // pred_region
        %p256 = scmp.lt.s32.totalorder %s18, 1
        %s257 = scalar_select %p256, %s18, 1
        %p258 = scmp.lt.s32.totalorder %s20, 0
        %s259 = scalar_select %p258, %s20, 0
        %s260 = sadd.s32 %s259, %s257
        %s261 = scalar_lea.vmem %s3, %s260
      $region32: #{tpu_custom_call.1} parent=15 // pred_fallthru
        _
      // Predicated region
      $region33: #{tpu_custom_call.1} parent=15 // pred_check
        %p262 = pneg %p166
      $region34: #{tpu_custom_call.1} parent=15 // pred_check_branch
        %264 = sbr.rel (%p262) target = $region36
      $region35: #{tpu_custom_call.1} parent=15 // pred_region
        %s265 = smul.u32 6, %s19
        %p266 = scmp.lt.s32.totalorder %s18, 1
        %s267 = scalar_select %p266, %s18, 1
        %p268 = scmp.lt.s32.totalorder %s265, 5
        %s269 = scalar_select %p268, %s265, 5
        %p270 = scmp.lt.s32.totalorder %s20, 0
        %s271 = scalar_select %p270, %s20, 0
        %s272 = sadd.s32 %s271, %s269
        %s273 = smul.addr %s267, 6
        %s274 = sadd.s32 %s272, %s273
        %s275 = smul.addr %s274, 8
        %s276 = scalar_lea.vmem %s4, %s275
        %s277 = smul.u32 6, %s19
      $region36: #{tpu_custom_call.1} parent=15 // pred_fallthru
        _
    $region16: #{tpu_custom_call.1} parent=5 // pred_fallthru
      _
    %p278 = scmp.le.s32.totalorder 1, %s11
    %p279 = scmp.lt.s32.totalorder %s11, 3
    %p280 = pnand %p278, %p279
    %p281 = pneg %p280
    // Predicated region
    $region37: #{tpu_custom_call.1} parent=5 // pred_check
      _
    $region38: #{tpu_custom_call.1} parent=5 // pred_check_branch
      %283 = sbr.rel (%p280) target = $region40
    $region39: #{tpu_custom_call.1} parent=5 // pred_region
      %s284 = ssub.s32 %s11, 1
      %s285 = smul.u32 6, %s22
      %p286 = scmp.lt.s32.totalorder %s21, 1
      %s287 = scalar_select %p286, %s21, 1
      %p288 = scmp.lt.s32.totalorder %s285, 5
      %s289 = scalar_select %p288, %s285, 5
      %s290 = smul.addr %s287, 18
      %s291 = sadd.s32 %s289, %s290
      %s292 = smul.addr %s291, 8
      %s293 = scalar_lea.vmem %s0, %s292
      %p294 = pneg %p58
      %p295 = pneg %p55
      %p296 = scmp.lt.s32.totalorder %s21, 1
      %s297 = scalar_select %p296, %s21, 1
      %p298 = scmp.lt.s32.totalorder %s23, 0
      %s299 = scalar_select %p298, %s23, 0
      %s300 = sadd.s32 %s299, %s297
      %s301 = smul.addr %s300, 8
      %s302 = scalar_lea.vmem %s1, %s301
      %p303 = pneg %p86
      %p304 = pneg %p83
      %s305 = smul.u32 6, %s22
      %p306 = scmp.lt.s32.totalorder %s21, 1
      %s307 = scalar_select %p306, %s21, 1
      %p308 = scmp.lt.s32.totalorder %s305, 5
      %s309 = scalar_select %p308, %s305, 5
      %s310 = smul.addr %s307, 6
      %s311 = sadd.s32 %s309, %s310
      %s312 = smul.addr %s311, 8
      %s313 = scalar_lea.vmem %s2, %s312
      %p314 = pneg %p114
      %p315 = pneg %p111
      %p316 = scmp.lt.s32.totalorder %s21, 1
      %s317 = scalar_select %p316, %s21, 1
      %p318 = scmp.lt.s32.totalorder %s23, 0
      %s319 = scalar_select %p318, %s23, 0
      %s320 = sadd.s32 %s319, %s317
      %s321 = scalar_lea.vmem %s3, %s320
      %p322 = pneg %p142
      %p323 = pneg %p139
      %s324 = smul.u32 6, %s22
      %p325 = scmp.lt.s32.totalorder %s21, 1
      %s326 = scalar_select %p325, %s21, 1
      %p327 = scmp.lt.s32.totalorder %s324, 5
      %s328 = scalar_select %p327, %s324, 5
      %p329 = scmp.lt.s32.totalorder %s23, 0
      %s330 = scalar_select %p329, %s23, 0
      %s331 = sadd.s32 %s330, %s328
      %s332 = smul.addr %s326, 6
      %s333 = sadd.s32 %s331, %s332
      %s334 = smul.addr %s333, 8
      %s335 = scalar_lea.vmem %s4, %s334
      %p336 = pneg %p172
      %p337 = pneg %p169
      %p338 = pneg %p198
      %p339 = pneg %p195
      %p340 = scmp.lt.s32.totalorder %s21, 1
      %s341 = scalar_select %p340, %s21, 1
      %s342 = scalar_lea.vmem %s5, %s341
      %s343 = smul.u32 6, %s22
      %p344 = scmp.lt.s32.totalorder %s21, 1
      %s345 = scalar_select %p344, %s21, 1
      %p346 = scmp.lt.s32.totalorder %s343, 5
      %s347 = scalar_select %p346, %s343, 5
      %s348 = smul.addr %s345, 18
      %s349 = sadd.s32 %s347, %s348
      %s350 = smul.addr %s349, 8
      %s351 = scalar_lea.vmem %s0, %s350
      %s352 = smul.u32 6, %s22
      %p353 = scmp.lt.s32.totalorder %s21, 1
      %s354 = scalar_select %p353, %s21, 1
      %p355 = scmp.lt.s32.totalorder %s23, 0
      %s356 = scalar_select %p355, %s23, 0
      %s357 = sadd.s32 %s356, %s354
      %s358 = smul.addr %s357, 8
      %s359 = scalar_lea.vmem %s1, %s358
      %s360 = smul.u32 6, %s22
      %p361 = scmp.lt.s32.totalorder %s21, 1
      %s362 = scalar_select %p361, %s21, 1
      %p363 = scmp.lt.s32.totalorder %s360, 5
      %s364 = scalar_select %p363, %s360, 5
      %s365 = smul.addr %s362, 6
      %s366 = sadd.s32 %s364, %s365
      %s367 = smul.addr %s366, 8
      %s368 = scalar_lea.vmem %s2, %s367
      %s369 = smul.u32 6, %s22
      %p370 = scmp.lt.s32.totalorder %s21, 1
      %s371 = scalar_select %p370, %s21, 1
      %p372 = scmp.lt.s32.totalorder %s23, 0
      %s373 = scalar_select %p372, %s23, 0
      %s374 = sadd.s32 %s373, %s371
      %s375 = scalar_lea.vmem %s3, %s374
      %s376 = smul.u32 6, %s22
      %p377 = scmp.lt.s32.totalorder %s21, 1
      %s378 = scalar_select %p377, %s21, 1
      %p379 = scmp.lt.s32.totalorder %s376, 5
      %s380 = scalar_select %p379, %s376, 5
      %p381 = scmp.lt.s32.totalorder %s23, 0
      %s382 = scalar_select %p381, %s23, 0
      %s383 = sadd.s32 %s382, %s380
      %s384 = smul.addr %s378, 6
      %s385 = sadd.s32 %s383, %s384
      %s386 = smul.addr %s385, 8
      %s387 = scalar_lea.vmem %s4, %s386
      %s388 = smul.u32 6, %s22
      %p389 = scmp.lt.s32.totalorder %s21, 1
      %s390 = scalar_select %p389, %s21, 1
      %s391 = scalar_lea.vmem %s5, %s390
      %p392 = scmp.eq.s32.totalorder %s22, 0
      %p393 = scmp.eq.s32.totalorder %s23, 0
      %p394 = pnand %p392, %p393
      %p395 = pneg %p394
      // Predicated region
      $region41: #{tpu_custom_call.1} parent=39 // pred_check
        _
      $region42: #{tpu_custom_call.1} parent=39 // pred_check_branch
        %397 = sbr.rel (%p394) target = $region44
      $region43: #{tpu_custom_call.1} parent=39 // pred_region
        %vm398 = vcmask 0
        %399 = vst.msk [vmem:[%s391] sm:$0x1] %vm398, 0.0
      $region44: #{tpu_custom_call.1} parent=39 // pred_fallthru
        _
      %v400 = vld [vmem:[%s359] sm:$0xff]
      %v401 = vld [vmem:[%s351] sm:$0xff]
      %v402 = vld [vmem:[%s351 + $0x8] sm:$0xff]
      %v403 = vld [vmem:[%s351 + $0x10] sm:$0xff]
      %v404 = vld [vmem:[%s351 + $0x18] sm:$0xff]
      %v405 = vld [vmem:[%s351 + $0x20] sm:$0xff]
      %v406 = vld [vmem:[%s351 + $0x28] sm:$0xff]
      %vm407 = vcmask 64512
      %v409 = vsel %vm407, %v401, 0
      %v412 = vsel %vm407, %v402, 0
      %v415 = vsel %vm407, %v403, 0
      %v418 = vsel %vm407, %v404, 0
      %v421 = vsel %vm407, %v405, 0
      %v424 = vsel %vm407, %v406, 0
      %426 = vmatprep.subr.mxu0 0.0
      %427 = vmatpush1.msra.mxu0 0.0
      %428 = vmatprep.subr.mxu0 0.0
      %429 = vmatpush1.msra.mxu0 0.0
      %430 = vmatprep.subr.mxu0 0.0
      %431 = vmatpush1.msra.mxu0 0.0
      %432 = vmatprep.subr.mxu0 0.0
      %433 = vmatpush1.msra.mxu0 0.0
      %434 = vmatprep.subr.mxu0 0.0
      %435 = vmatpush1.msra.mxu0 0.0
      %436 = vmatprep.subr.mxu0 0.0
      %437 = vmatpush1.msra.mxu0 0.0
      %438 = vmatprep.subr.mxu0 0.0
      %439 = vmatpush1.msra.mxu0 0.0
      %440 = vmatprep.subr.mxu0 0.0
      %441 = vmatpush1.msra.mxu0 0.0
      %442 = vmatprep.subr.mxu0 0.0
      %443 = vmatpush1.msra.mxu0 0.0
      %444 = vmatprep.subr.mxu0 0.0
      %445 = vmatpush1.msra.mxu0 0.0
      %446 = vmatprep.subr.mxu0 0.0
      %447 = vmatpush1.msra.mxu0 0.0
      %448 = vmatprep.subr.mxu0 0.0
      %449 = vmatpush1.msra.mxu0 0.0
      %450 = vmatprep.subr.mxu0 0.0
      %451 = vmatpush1.msra.mxu0 0.0
      %452 = vmatprep.subr.mxu0 0.0
      %453 = vmatpush1.msra.mxu0 0.0
      %454 = vmatprep.subr.mxu0 0.0
      %455 = vmatpush1.msra.mxu0 0.0
      %456 = vmatprep.subr.mxu0 0.0
      %457 = vmatpush1.msra.mxu0 %v400
      %458 = vmatprep.subr.mxu0 0.0
      %459 = vmatpush2.msra.mxu0 0.0
      %460 = vmatprep.subr.mxu0 0.0
      %461 = vmatpush2.msra.mxu0 0.0
      %462 = vmatprep.subr.mxu0 0.0
      %463 = vmatpush2.msra.mxu0 0.0
      %464 = vmatprep.subr.mxu0 0.0
      %465 = vmatpush2.msra.mxu0 0.0
      %466 = vmatprep.subr.mxu0 0.0
      %467 = vmatpush2.msra.mxu0 0.0
      %468 = vmatprep.subr.mxu0 0.0
      %469 = vmatpush2.msra.mxu0 0.0
      %470 = vmatprep.subr.mxu0 0.0
      %471 = vmatpush2.msra.mxu0 0.0
      %472 = vmatprep.subr.mxu0 0.0
      %473 = vmatpush2.msra.mxu0 0.0
      %474 = vmatprep.subr.mxu0 0.0
      %475 = vmatpush2.msra.mxu0 0.0
      %476 = vmatprep.subr.mxu0 0.0
      %477 = vmatpush2.msra.mxu0 0.0
      %478 = vmatprep.subr.mxu0 0.0
      %479 = vmatpush2.msra.mxu0 0.0
      %480 = vmatprep.subr.mxu0 0.0
      %481 = vmatpush2.msra.mxu0 0.0
      %482 = vmatprep.subr.mxu0 0.0
      %483 = vmatpush2.msra.mxu0 0.0
      %484 = vmatprep.subr.mxu0 0.0
      %485 = vmatpush2.msra.mxu0 0.0
      %486 = vmatprep.subr.mxu0 0.0
      %487 = vmatpush2.msra.mxu0 0.0
      %488 = vmatprep.subr.mxu0 0.0
      %489 = vmatpush2.msra.mxu0 0.0
      %490 = vmatprep.mubr.f32.mxu0 0.0
      %491 = vmatmul.mubr.f32.gmra.mxu0 %v409
      %v492 = vpop.f32.mrf.mxu0
      %v493 = vadd.f32 0.0, %v492
      %v494 = vpop.f32.mrf.mxu0
      %495 = vmatprep.mubr.f32.mxu0 0.0
      %496 = vmatmul.mubr.f32.gmra.mxu0 %v412
      %v497 = vpop.f32.mrf.mxu0
      %v498 = vadd.f32 0.0, %v497
      %v499 = vpop.f32.mrf.mxu0
      %500 = vmatprep.mubr.f32.mxu0 0.0
      %501 = vmatmul.mubr.f32.gmra.mxu0 %v415
      %v502 = vpop.f32.mrf.mxu0
      %v503 = vadd.f32 0.0, %v502
      %v504 = vpop.f32.mrf.mxu0
      %505 = vmatprep.mubr.f32.mxu0 0.0
      %506 = vmatmul.mubr.f32.gmra.mxu0 %v418
      %v507 = vpop.f32.mrf.mxu0
      %v508 = vadd.f32 0.0, %v507
      %v509 = vpop.f32.mrf.mxu0
      %510 = vmatprep.mubr.f32.mxu0 0.0
      %511 = vmatmul.mubr.f32.gmra.mxu0 %v421
      %v512 = vpop.f32.mrf.mxu0
      %v513 = vadd.f32 0.0, %v512
      %v514 = vpop.f32.mrf.mxu0
      %515 = vmatprep.mubr.f32.mxu0 0.0
      %516 = vmatmul.mubr.f32.gmra.mxu0 %v424
      %v517 = vpop.f32.mrf.mxu0
      %v518 = vadd.f32 0.0, %v517
      %v519 = vpop.f32.mrf.mxu0
      %520 = vdwg.mxu0
      %v521 = vmul.f32 %v493, %v493
      %v522 = vmul.f32 %v498, %v498
      %v523 = vmul.f32 %v503, %v503
      %v524 = vmul.f32 %v508, %v508
      %v525 = vmul.f32 %v513, %v513
      %v526 = vmul.f32 %v518, %v518
      %v527 = vadd.f32 %v521, 0.0001
      %v528 = vadd.f32 %v522, 0.0001
      %v529 = vadd.f32 %v523, 0.0001
      %v530 = vadd.f32 %v524, 0.0001
      %v531 = vadd.f32 %v525, 0.0001
      %v532 = vadd.f32 %v526, 0.0001
      %s533 = scalar_lea.vmem %s351, 48
      %v534 = vld [vmem:[%s533] sm:$0xff]
      %v535 = vld [vmem:[%s533 + $0x8] sm:$0xff]
      %v536 = vld [vmem:[%s533 + $0x10] sm:$0xff]
      %v537 = vld [vmem:[%s533 + $0x18] sm:$0xff]
      %v538 = vld [vmem:[%s533 + $0x20] sm:$0xff]
      %v539 = vld [vmem:[%s533 + $0x28] sm:$0xff]
      %v541 = vsel %vm407, %v534, 0
      %v544 = vsel %vm407, %v535, 0
      %v547 = vsel %vm407, %v536, 0
      %v550 = vsel %vm407, %v537, 0
      %v553 = vsel %vm407, %v538, 0
      %v556 = vsel %vm407, %v539, 0
      %558 = vmatprep.subr.mxu0 0.0
      %559 = vmatpush1.msra.mxu0 0.0
      %560 = vmatprep.subr.mxu0 0.0
      %561 = vmatpush1.msra.mxu0 0.0
      %562 = vmatprep.subr.mxu0 0.0
      %563 = vmatpush1.msra.mxu0 0.0
      %564 = vmatprep.subr.mxu0 0.0
      %565 = vmatpush1.msra.mxu0 0.0
      %566 = vmatprep.subr.mxu0 0.0
      %567 = vmatpush1.msra.mxu0 0.0
      %568 = vmatprep.subr.mxu0 0.0
      %569 = vmatpush1.msra.mxu0 0.0
      %570 = vmatprep.subr.mxu0 0.0
      %571 = vmatpush1.msra.mxu0 0.0
      %572 = vmatprep.subr.mxu0 0.0
      %573 = vmatpush1.msra.mxu0 0.0
      %574 = vmatprep.subr.mxu0 0.0
      %575 = vmatpush1.msra.mxu0 0.0
      %576 = vmatprep.subr.mxu0 0.0
      %577 = vmatpush1.msra.mxu0 0.0
      %578 = vmatprep.subr.mxu0 0.0
      %579 = vmatpush1.msra.mxu0 0.0
      %580 = vmatprep.subr.mxu0 0.0
      %581 = vmatpush1.msra.mxu0 0.0
      %582 = vmatprep.subr.mxu0 0.0
      %583 = vmatpush1.msra.mxu0 0.0
      %584 = vmatprep.subr.mxu0 0.0
      %585 = vmatpush1.msra.mxu0 0.0
      %586 = vmatprep.subr.mxu0 0.0
      %587 = vmatpush1.msra.mxu0 0.0
      %588 = vmatprep.subr.mxu0 0.0
      %589 = vmatpush1.msra.mxu0 %v400
      %590 = vmatprep.subr.mxu0 0.0
      %591 = vmatpush2.msra.mxu0 0.0
      %592 = vmatprep.subr.mxu0 0.0
      %593 = vmatpush2.msra.mxu0 0.0
      %594 = vmatprep.subr.mxu0 0.0
      %595 = vmatpush2.msra.mxu0 0.0
      %596 = vmatprep.subr.mxu0 0.0
      %597 = vmatpush2.msra.mxu0 0.0
      %598 = vmatprep.subr.mxu0 0.0
      %599 = vmatpush2.msra.mxu0 0.0
      %600 = vmatprep.subr.mxu0 0.0
      %601 = vmatpush2.msra.mxu0 0.0
      %602 = vmatprep.subr.mxu0 0.0
      %603 = vmatpush2.msra.mxu0 0.0
      %604 = vmatprep.subr.mxu0 0.0
      %605 = vmatpush2.msra.mxu0 0.0
      %606 = vmatprep.subr.mxu0 0.0
      %607 = vmatpush2.msra.mxu0 0.0
      %608 = vmatprep.subr.mxu0 0.0
      %609 = vmatpush2.msra.mxu0 0.0
      %610 = vmatprep.subr.mxu0 0.0
      %611 = vmatpush2.msra.mxu0 0.0
      %612 = vmatprep.subr.mxu0 0.0
      %613 = vmatpush2.msra.mxu0 0.0
      %614 = vmatprep.subr.mxu0 0.0
      %615 = vmatpush2.msra.mxu0 0.0
      %616 = vmatprep.subr.mxu0 0.0
      %617 = vmatpush2.msra.mxu0 0.0
      %618 = vmatprep.subr.mxu0 0.0
      %619 = vmatpush2.msra.mxu0 0.0
      %620 = vmatprep.subr.mxu0 0.0
      %621 = vmatpush2.msra.mxu0 0.0
      %622 = vmatprep.mubr.f32.mxu0 0.0
      %623 = vmatmul.mubr.f32.gmra.mxu0 %v541
      %v624 = vpop.f32.mrf.mxu0
      %v625 = vadd.f32 0.0, %v624
      %v626 = vpop.f32.mrf.mxu0
      %627 = vmatprep.mubr.f32.mxu0 0.0
      %628 = vmatmul.mubr.f32.gmra.mxu0 %v544
      %v629 = vpop.f32.mrf.mxu0
      %v630 = vadd.f32 0.0, %v629
      %v631 = vpop.f32.mrf.mxu0
      %632 = vmatprep.mubr.f32.mxu0 0.0
      %633 = vmatmul.mubr.f32.gmra.mxu0 %v547
      %v634 = vpop.f32.mrf.mxu0
      %v635 = vadd.f32 0.0, %v634
      %v636 = vpop.f32.mrf.mxu0
      %637 = vmatprep.mubr.f32.mxu0 0.0
      %638 = vmatmul.mubr.f32.gmra.mxu0 %v550
      %v639 = vpop.f32.mrf.mxu0
      %v640 = vadd.f32 0.0, %v639
      %v641 = vpop.f32.mrf.mxu0
      %642 = vmatprep.mubr.f32.mxu0 0.0
      %643 = vmatmul.mubr.f32.gmra.mxu0 %v553
      %v644 = vpop.f32.mrf.mxu0
      %v645 = vadd.f32 0.0, %v644
      %v646 = vpop.f32.mrf.mxu0
      %647 = vmatprep.mubr.f32.mxu0 0.0
      %648 = vmatmul.mubr.f32.gmra.mxu0 %v556
      %v649 = vpop.f32.mrf.mxu0
      %v650 = vadd.f32 0.0, %v649
      %v651 = vpop.f32.mrf.mxu0
      %652 = vdwg.mxu0
      %v653 = vmul.f32 %v625, %v625
      %v654 = vmul.f32 %v630, %v630
      %v655 = vmul.f32 %v635, %v635
      %v656 = vmul.f32 %v640, %v640
      %v657 = vmul.f32 %v645, %v645
      %v658 = vmul.f32 %v650, %v650
      %v659 = vadd.f32 %v527, %v653
      %v660 = vadd.f32 %v528, %v654
      %v661 = vadd.f32 %v529, %v655
      %v662 = vadd.f32 %v530, %v656
      %v663 = vadd.f32 %v531, %v657
      %v664 = vadd.f32 %v532, %v658
      %s665 = scalar_lea.vmem %s351, 96
      %v666 = vld [vmem:[%s665] sm:$0xff]
      %v667 = vld [vmem:[%s665 + $0x8] sm:$0xff]
      %v668 = vld [vmem:[%s665 + $0x10] sm:$0xff]
      %v669 = vld [vmem:[%s665 + $0x18] sm:$0xff]
      %v670 = vld [vmem:[%s665 + $0x20] sm:$0xff]
      %v671 = vld [vmem:[%s665 + $0x28] sm:$0xff]
      %v673 = vsel %vm407, %v666, 0
      %v676 = vsel %vm407, %v667, 0
      %v679 = vsel %vm407, %v668, 0
      %v682 = vsel %vm407, %v669, 0
      %v685 = vsel %vm407, %v670, 0
      %v688 = vsel %vm407, %v671, 0
      %690 = vmatprep.subr.mxu0 0.0
      %691 = vmatpush1.msra.mxu0 0.0
      %692 = vmatprep.subr.mxu0 0.0
      %693 = vmatpush1.msra.mxu0 0.0
      %694 = vmatprep.subr.mxu0 0.0
      %695 = vmatpush1.msra.mxu0 0.0
      %696 = vmatprep.subr.mxu0 0.0
      %697 = vmatpush1.msra.mxu0 0.0
      %698 = vmatprep.subr.mxu0 0.0
      %699 = vmatpush1.msra.mxu0 0.0
      %700 = vmatprep.subr.mxu0 0.0
      %701 = vmatpush1.msra.mxu0 0.0
      %702 = vmatprep.subr.mxu0 0.0
      %703 = vmatpush1.msra.mxu0 0.0
      %704 = vmatprep.subr.mxu0 0.0
      %705 = vmatpush1.msra.mxu0 0.0
      %706 = vmatprep.subr.mxu0 0.0
      %707 = vmatpush1.msra.mxu0 0.0
      %708 = vmatprep.subr.mxu0 0.0
      %709 = vmatpush1.msra.mxu0 0.0
      %710 = vmatprep.subr.mxu0 0.0
      %711 = vmatpush1.msra.mxu0 0.0
      %712 = vmatprep.subr.mxu0 0.0
      %713 = vmatpush1.msra.mxu0 0.0
      %714 = vmatprep.subr.mxu0 0.0
      %715 = vmatpush1.msra.mxu0 0.0
      %716 = vmatprep.subr.mxu0 0.0
      %717 = vmatpush1.msra.mxu0 0.0
      %718 = vmatprep.subr.mxu0 0.0
      %719 = vmatpush1.msra.mxu0 0.0
      %720 = vmatprep.subr.mxu0 0.0
      %721 = vmatpush1.msra.mxu0 %v400
      %722 = vmatprep.subr.mxu0 0.0
      %723 = vmatpush2.msra.mxu0 0.0
      %724 = vmatprep.subr.mxu0 0.0
      %725 = vmatpush2.msra.mxu0 0.0
      %726 = vmatprep.subr.mxu0 0.0
      %727 = vmatpush2.msra.mxu0 0.0
      %728 = vmatprep.subr.mxu0 0.0
      %729 = vmatpush2.msra.mxu0 0.0
      %730 = vmatprep.subr.mxu0 0.0
      %731 = vmatpush2.msra.mxu0 0.0
      %732 = vmatprep.subr.mxu0 0.0
      %733 = vmatpush2.msra.mxu0 0.0
      %734 = vmatprep.subr.mxu0 0.0
      %735 = vmatpush2.msra.mxu0 0.0
      %736 = vmatprep.subr.mxu0 0.0
      %737 = vmatpush2.msra.mxu0 0.0
      %738 = vmatprep.subr.mxu0 0.0
      %739 = vmatpush2.msra.mxu0 0.0
      %740 = vmatprep.subr.mxu0 0.0
      %741 = vmatpush2.msra.mxu0 0.0
      %742 = vmatprep.subr.mxu0 0.0
      %743 = vmatpush2.msra.mxu0 0.0
      %744 = vmatprep.subr.mxu0 0.0
      %745 = vmatpush2.msra.mxu0 0.0
      %746 = vmatprep.subr.mxu0 0.0
      %747 = vmatpush2.msra.mxu0 0.0
      %748 = vmatprep.subr.mxu0 0.0
      %749 = vmatpush2.msra.mxu0 0.0
      %750 = vmatprep.subr.mxu0 0.0
      %751 = vmatpush2.msra.mxu0 0.0
      %752 = vmatprep.subr.mxu0 0.0
      %753 = vmatpush2.msra.mxu0 0.0
      %754 = vmatprep.mubr.f32.mxu0 0.0
      %755 = vmatmul.mubr.f32.gmra.mxu0 %v673
      %v756 = vpop.f32.mrf.mxu0
      %v757 = vadd.f32 0.0, %v756
      %v758 = vpop.f32.mrf.mxu0
      %759 = vmatprep.mubr.f32.mxu0 0.0
      %760 = vmatmul.mubr.f32.gmra.mxu0 %v676
      %v761 = vpop.f32.mrf.mxu0
      %v762 = vadd.f32 0.0, %v761
      %v763 = vpop.f32.mrf.mxu0
      %764 = vmatprep.mubr.f32.mxu0 0.0
      %765 = vmatmul.mubr.f32.gmra.mxu0 %v679
      %v766 = vpop.f32.mrf.mxu0
      %v767 = vadd.f32 0.0, %v766
      %v768 = vpop.f32.mrf.mxu0
      %769 = vmatprep.mubr.f32.mxu0 0.0
      %770 = vmatmul.mubr.f32.gmra.mxu0 %v682
      %v771 = vpop.f32.mrf.mxu0
      %v772 = vadd.f32 0.0, %v771
      %v773 = vpop.f32.mrf.mxu0
      %774 = vmatprep.mubr.f32.mxu0 0.0
      %775 = vmatmul.mubr.f32.gmra.mxu0 %v685
      %v776 = vpop.f32.mrf.mxu0
      %v777 = vadd.f32 0.0, %v776
      %v778 = vpop.f32.mrf.mxu0
      %779 = vmatprep.mubr.f32.mxu0 0.0
      %780 = vmatmul.mubr.f32.gmra.mxu0 %v688
      %v781 = vpop.f32.mrf.mxu0
      %v782 = vadd.f32 0.0, %v781
      %v783 = vpop.f32.mrf.mxu0
      %784 = vdwg.mxu0
      %v785 = vmul.f32 %v757, %v757
      %v786 = vmul.f32 %v762, %v762
      %v787 = vmul.f32 %v767, %v767
      %v788 = vmul.f32 %v772, %v772
      %v789 = vmul.f32 %v777, %v777
      %v790 = vmul.f32 %v782, %v782
      %v791 = vadd.f32 %v659, %v785
      %v792 = vadd.f32 %v660, %v786
      %v793 = vadd.f32 %v661, %v787
      %v794 = vadd.f32 %v662, %v788
      %v795 = vadd.f32 %v663, %v789
      %v796 = vadd.f32 %v664, %v790
      %v797 = vrsqrt.pop %v791
      %v798 = vmul.f32 %v791, %v797
      %vm799 = vcmp.eq.f32.partialorder %v791, inf
      %v800 = vsel %vm799, %v791, %v798
      %vm801 = vcmp.eq.f32.partialorder %v791, 0.0
      %v802 = vand.u32 %v791, 2147483648
      %v803 = vsel %vm801, %v802, %v800
      %v804 = vrsqrt.pop %v792
      %v805 = vmul.f32 %v792, %v804
      %vm806 = vcmp.eq.f32.partialorder %v792, inf
      %v807 = vsel %vm806, %v792, %v805
      %vm808 = vcmp.eq.f32.partialorder %v792, 0.0
      %v809 = vand.u32 %v792, 2147483648
      %v810 = vsel %vm808, %v809, %v807
      %v811 = vrsqrt.pop %v793
      %v812 = vmul.f32 %v793, %v811
      %vm813 = vcmp.eq.f32.partialorder %v793, inf
      %v814 = vsel %vm813, %v793, %v812
      %vm815 = vcmp.eq.f32.partialorder %v793, 0.0
      %v816 = vand.u32 %v793, 2147483648
      %v817 = vsel %vm815, %v816, %v814
      %v818 = vrsqrt.pop %v794
      %v819 = vmul.f32 %v794, %v818
      %vm820 = vcmp.eq.f32.partialorder %v794, inf
      %v821 = vsel %vm820, %v794, %v819
      %vm822 = vcmp.eq.f32.partialorder %v794, 0.0
      %v823 = vand.u32 %v794, 2147483648
      %v824 = vsel %vm822, %v823, %v821
      %v825 = vrsqrt.pop %v795
      %v826 = vmul.f32 %v795, %v825
      %vm827 = vcmp.eq.f32.partialorder %v795, inf
      %v828 = vsel %vm827, %v795, %v826
      %vm829 = vcmp.eq.f32.partialorder %v795, 0.0
      %v830 = vand.u32 %v795, 2147483648
      %v831 = vsel %vm829, %v830, %v828
      %v832 = vrsqrt.pop %v796
      %v833 = vmul.f32 %v796, %v832
      %vm834 = vcmp.eq.f32.partialorder %v796, inf
      %v835 = vsel %vm834, %v796, %v833
      %vm836 = vcmp.eq.f32.partialorder %v796, 0.0
      %v837 = vand.u32 %v796, 2147483648
      %v838 = vsel %vm836, %v837, %v835
      %v839 = vld [vmem:[%s387] sm:$0xff]
      %v840 = vld [vmem:[%s387 + $0x8] sm:$0xff]
      %v841 = vld [vmem:[%s387 + $0x10] sm:$0xff]
      %v842 = vld [vmem:[%s387 + $0x18] sm:$0xff]
      %v843 = vld [vmem:[%s387 + $0x20] sm:$0xff]
      %v844 = vld [vmem:[%s387 + $0x28] sm:$0xff]
      %vm845 = vcmp.gt.f32.partialorder %v839, 0.5
      %vm846 = vcmp.gt.f32.partialorder %v840, 0.5
      %vm847 = vcmp.gt.f32.partialorder %v841, 0.5
      %vm848 = vcmp.gt.f32.partialorder %v842, 0.5
      %vm849 = vcmp.gt.f32.partialorder %v843, 0.5
      %vm850 = vcmp.gt.f32.partialorder %v844, 0.5
      %vm851 = vcmp.gt.f32.partialorder %v803, 10.0
      %vm852 = vcmp.gt.f32.partialorder %v810, 10.0
      %vm853 = vcmp.gt.f32.partialorder %v817, 10.0
      %vm854 = vcmp.gt.f32.partialorder %v824, 10.0
      %vm855 = vcmp.gt.f32.partialorder %v831, 10.0
      %vm856 = vcmp.gt.f32.partialorder %v838, 10.0
      %vm857 = vmand %vm845, %vm851
      %vm858 = vmand %vm846, %vm852
      %vm859 = vmand %vm847, %vm853
      %vm860 = vmand %vm848, %vm854
      %vm861 = vmand %vm849, %vm855
      %vm862 = vmand %vm850, %vm856
      %v863 = vsel %vm857, 10.0, %v803
      %v864 = vsel %vm858, 10.0, %v810
      %v865 = vsel %vm859, 10.0, %v817
      %v866 = vsel %vm860, 10.0, %v824
      %v867 = vsel %vm861, 10.0, %v831
      %v868 = vsel %vm862, 10.0, %v838
      %v869 = vld [vmem:[%s375] sm:$0x1]
      %v871 = vlaneseq
      %v872 = vshrl.u32 %v871, 7
      %v873 = vsub.s32 0, %v872
      %v874 = vrot.slane %v869, %v873
      %v876 = vmul.f32 %v863, %v874
      %v877 = vmul.f32 %v864, %v874
      %v878 = vmul.f32 %v865, %v874
      %v879 = vmul.f32 %v866, %v874
      %v880 = vmul.f32 %v867, %v874
      %v881 = vmul.f32 %v868, %v874
      %vm882 = vcmask 916480
      %v883 = vsel %vm882, %v876, 0.0
      %884 = vadd.xlane.f32.xlu0 %v883
      %v885 = vpop.xlane.xlu0 %884
      %v886 = vsel %vm882, %v877, 0.0
      %887 = vadd.xlane.f32.xlu0 %v886
      %v888 = vpop.xlane.xlu0 %887
      %v889 = vsel %vm882, %v878, 0.0
      %890 = vadd.xlane.f32.xlu0 %v889
      %v891 = vpop.xlane.xlu0 %890
      %v892 = vsel %vm882, %v879, 0.0
      %893 = vadd.xlane.f32.xlu0 %v892
      %v894 = vpop.xlane.xlu0 %893
      %v895 = vsel %vm882, %v880, 0.0
      %896 = vadd.xlane.f32.xlu0 %v895
      %v897 = vpop.xlane.xlu0 %896
      %v898 = vsel %vm882, %v881, 0.0
      %899 = vadd.xlane.f32.xlu0 %v898
      %v900 = vpop.xlane.xlu0 %899
      %v901 = vld [vmem:[%s391] sm:$0x1]
      %v902 = vld [vmem:[%s368] sm:$0xff]
      %v903 = vld [vmem:[%s368 + $0x8] sm:$0xff]
      %v904 = vld [vmem:[%s368 + $0x10] sm:$0xff]
      %v905 = vld [vmem:[%s368 + $0x18] sm:$0xff]
      %v906 = vld [vmem:[%s368 + $0x20] sm:$0xff]
      %v907 = vld [vmem:[%s368 + $0x28] sm:$0xff]
      %v908 = vmul.f32 %v885, %v902
      %v909 = vmul.f32 %v888, %v903
      %v910 = vmul.f32 %v891, %v904
      %v911 = vmul.f32 %v894, %v905
      %v912 = vmul.f32 %v897, %v906
      %v913 = vmul.f32 %v900, %v907
      %vm914 = vcmask 7168
      %v915 = vsel %vm914, %v908, 0.0
      %v916 = vsel %vm914, %v909, 0.0
      %v917 = vadd.f32 %v915, %v916
      %v918 = vsel %vm914, %v910, 0.0
      %v919 = vadd.f32 %v917, %v918
      %v920 = vsel %vm914, %v911, 0.0
      %v921 = vadd.f32 %v919, %v920
      %v922 = vsel %vm914, %v912, 0.0
      %v923 = vadd.f32 %v921, %v922
      %v924 = vsel %vm914, %v913, 0.0
      %v925 = vadd.f32 %v923, %v924
      %v926 = vrot.slane %v925, 4
      %v927 = vadd.f32 %v925, %v926
      %v928 = vrot.slane %v927, 2
      %v929 = vadd.f32 %v927, %v928
      %v930 = vrot.slane %v929, 1
      %v931 = vadd.f32 %v929, %v930
      %v932 = vadd.f32 %v901, %v931
      %vm933 = vcmask 0
      %934 = vst.msk [vmem:[%s391] sm:$0x1] %vm933, %v932
      %p935 = scmp.lt.s32.totalorder %s21, 1
      %s936 = scalar_select %p935, %s21, 1
      %s937 = scalar_lea.vmem %s5, %s936
      // Predicated region
      $region45: #{tpu_custom_call.1} parent=39 // pred_check
        %p938 = pneg %p195
      $region46: #{tpu_custom_call.1} parent=39 // pred_check_branch
        %940 = sbr.rel (%p938) target = $region48
      $region47: #{tpu_custom_call.1} parent=39 // pred_region
        _
      $region48: #{tpu_custom_call.1} parent=39 // pred_fallthru
        _
    $region40: #{tpu_custom_call.1} parent=5 // pred_fallthru
      _
    %p941 = scmp.le.s32.totalorder 2, %s11
    // Predicated region
    $region49: #{tpu_custom_call.1} parent=5 // pred_check
      %p942 = pneg %p941
    $region50: #{tpu_custom_call.1} parent=5 // pred_check_branch
      %944 = sbr.rel (%p942) target = $region52
    $region51: #{tpu_custom_call.1} parent=5 // pred_region
      %s945 = ssub.s32 %s11, 2
      // Predicated region
      $region53: #{tpu_custom_call.1} parent=51 // pred_check
        %p946 = pneg %p201
      $region54: #{tpu_custom_call.1} parent=51 // pred_check_branch
        %948 = sbr.rel (%p946) target = $region56
      $region55: #{tpu_custom_call.1} parent=51 // pred_region
        %p949 = scmp.lt.s32.totalorder %s24, 1
        %s950 = scalar_select %p949, %s24, 1
        %s951 = scalar_lea.vmem %s5, %s950
      $region56: #{tpu_custom_call.1} parent=51 // pred_fallthru
        _
    $region52: #{tpu_custom_call.1} parent=5 // pred_fallthru
      _
  $region6: #{tpu_custom_call.1} parent=0 // loop_footer
    %s15 = sadd.s32 1, %s11
  $region7: #{tpu_custom_call.1} parent=0 // loop_footer_branch
    %10 = sbr.rel target = $region3
  $region8: #{tpu_custom_call.1} parent=0 // loop_exit
    _

</llo_original>
